<compile_context>
chip_gen: v7x
topology: tpu7x:2x2x1
jax: 0.10.0
libtpu: 0.0.40
codegen_flags: <defaults>
</compile_context>

<pallas_src>
import functools

import jax
import jax.numpy as jnp
from jax.experimental import pallas as pl
from jax.experimental.pallas import tpu as pltpu

LANES = 128
# 4096 rows x 128 lanes x 4 B = 2 MiB of f32 per input per grid step.
MAX_BLOCK_ROWS = 4096
# Device kinds with two TensorCores per chip (worth a leading "parallel" axis).
_TWO_CORE_MARKERS = ("v4", "v5p", "v7", "tpu7")


def _num_core_splits():
    try:
        kind = jax.devices()[0].device_kind.lower()
    except Exception:
        return 1
    return 2 if any(m in kind for m in _TWO_CORE_MARKERS) else 1


def _hdr_loss_kernel(x_ref, y_ref, out_ref, *, eps, steps_per_split,
                     total_blocks, total_rows, guard_redundant, mask_rows):
    c = pl.program_id(0)            # core split       ("parallel")
    i = pl.program_id(1)            # reduction step   ("arbitrary")
    block_rows = x_ref.shape[0]
    block_idx = c * steps_per_split + i

    @pl.when(i == 0)
    def _init():
        out_ref[...] = jnp.zeros_like(out_ref)   # resident accumulator block

    def _accumulate():
        # Load in native dtype; upcast on the VPU.
        x = x_ref[...].astype(jnp.float32)
        y = y_ref[...].astype(jnp.float32)
        e = x - y
        e2 = e * e
        a2 = x * x

        # (re, im) pairs are interleaved along lanes.  Build a direction-
        # agnostic "swap adjacent lanes" via a tiny (1,128) probe so the kernel
        # never depends on the hardware rotate direction; the extra roll goes
        # to the idle XLU slot of this memory-bound kernel.
        lane = jax.lax.broadcasted_iota(jnp.int32, (1, LANES), 1)
        partner = jnp.bitwise_xor(lane, 1)                       # i ^ 1
        use_fwd = pltpu.roll(lane, shift=1, axis=1) == partner   # (1,128) bool

        def pair_sum(v):             # v[i] + v[partner(i)] at every lane
            fwd = pltpu.roll(v, shift=1, axis=1)
            bwd = pltpu.roll(v, shift=LANES - 1, axis=1)
            return v + jnp.where(use_fwd, fwd, bwd)

        pe = pair_sum(e2)                        # |error|^2 at every lane
        pa = pair_sum(a2)                        # |input|^2 at every lane
        denom = jnp.sqrt(pa) + eps
        ratio = pe / (denom * denom)             # each complex elem counted twice

        if mask_rows:                            # only when a trailing block is partial
            row = jax.lax.broadcasted_iota(jnp.int32, (block_rows, 1), 0)
            ratio = jnp.where(row < total_rows - block_idx * block_rows,
                              ratio, 0.0)

        # Fold rows: ~1 VPU add per vreg; keeps the accumulator at one vreg row.
        out_ref[...] += jnp.sum(ratio, axis=0, keepdims=True)

    if guard_redundant:
        # Skip the clamped redundant trailing step of the second core split.
        pl.when(block_idx < total_blocks)(_accumulate)
    else:
        _accumulate()


def _as_real_pairs(a):
    """Mirror torch.view_as_complex handling: float arrays keep their trailing
    (real, imag) dim of size 2; complex arrays are bit-viewed as such."""
    if jnp.iscomplexobj(a):
        try:
            a = jax.lax.bitcast_convert_type(a, jnp.float32)   # copy-free view
        except Exception:
            # TODO(synk): fallback costs one real/imag split copy when bitcast
            # of this complex dtype is unsupported on the backend.
            a = jnp.stack((jnp.real(a).astype(jnp.float32),
                           jnp.imag(a).astype(jnp.float32)), axis=-1)
    assert a.shape[-1] == 2, "expected trailing (real, imag) dim of size 2"
    return a


def _flat_rows(a):
    """Flatten to a lane-dense (rows, 128) slab in the array's native dtype.
    The reshape is free for contiguous arrays; padding (with 1.0, which
    contributes exactly 0 to the loss) only happens when the element count is
    not already a multiple of 128."""
    flat = a.reshape(-1)
    pad = (-flat.shape[0]) % LANES
    if pad:
        # TODO(synk): ragged sizes still cost one pad copy; aligned sizes are copy-free.
        flat = jnp.pad(flat, (0, pad), constant_values=1)
    return flat.reshape(-1, LANES)


def log_space_loss(input, target, *, eps):
    """Forward pass of LogSpaceLoss (simplified HDR loss) via a Pallas kernel."""
    x = _as_real_pairs(input)
    y = _as_real_pairs(target)
    assert x.shape == y.shape, (x.shape, y.shape)

    n_floats = x.size                   # == 2 * number of complex elements

    x2 = _flat_rows(x)
    y2 = _flat_rows(y)
    rows = x2.shape[0]

    block_rows = min(MAX_BLOCK_ROWS, rows)
    total_blocks = pl.cdiv(rows, block_rows)
    num_splits = min(_num_core_splits(), total_blocks)
    steps = pl.cdiv(total_blocks, num_splits)
    guard_redundant = num_splits * steps != total_blocks
    mask_rows = rows % block_rows != 0

    def in_map(c, i):
        # Clamp the (possibly) redundant trailing step of the second core
        # split; its contribution is skipped inside the kernel.
        return (jnp.minimum(c * steps + i, total_blocks - 1), 0)

    kernel = functools.partial(
        _hdr_loss_kernel,
        eps=float(eps),
        steps_per_split=steps,
        total_blocks=total_blocks,
        total_rows=rows,
        guard_redundant=guard_redundant,
        mask_rows=mask_rows,
    )

    partials = pl.pallas_call(
        kernel,
        out_shape=jax.ShapeDtypeStruct((num_splits, LANES), jnp.float32),
        grid_spec=pltpu.PrefetchScalarGridSpec(
            num_scalar_prefetch=0,
            grid=(num_splits, steps),
            in_specs=[
                pl.BlockSpec((block_rows, LANES), in_map),
                pl.BlockSpec((block_rows, LANES), in_map),
            ],
            out_specs=pl.BlockSpec((1, LANES), lambda c, i: (c, 0)),
        ),
        compiler_params=pltpu.CompilerParams(
            dimension_semantics=("parallel", "arbitrary")),
    )(x2, y2)

    # Every complex element was counted at both of its (re, im) lanes.
    return jnp.sum(partials) / jnp.float32(n_floats)


class LogSpaceLoss:
    """Forward-only equivalent of the PyTorch LogSpaceLoss module."""

    def __init__(self, config):
        self.sigma = float(config['hdr_ff_sigma'])    # unused in forward (as in torch)
        self.eps = float(config['hdr_eps'])
        self.factor = float(config['hdr_ff_factor'])  # unused in forward (as in torch)

    def __call__(self, input, target):
        return log_space_loss(input, target, eps=self.eps)


def _reference(input, target, eps):
    zi = jax.lax.complex(input[..., 0].astype(jnp.float32),
                         input[..., 1].astype(jnp.float32))
    zt = jax.lax.complex(target[..., 0].astype(jnp.float32),
                         target[..., 1].astype(jnp.float32))
    err = zi - zt
    return jnp.mean((jnp.abs(err) / (jnp.abs(zi) + eps)) ** 2)


if __name__ == "__main__":
    cfg = {'hdr_ff_sigma': 1.0, 'hdr_eps': 1e-2, 'hdr_ff_factor': 1.0}
    loss_fn = LogSpaceLoss(cfg)

    shapes = [
        (2, 4, 16, 16, 2),     # primary small case: 4096 floats -> 32 aligned rows
        (2, 3, 5, 7, 2),       # ragged: exercises the lane-padding path
        (16, 8, 64, 64, 2),    # 8192 rows -> multi-block reduction (2 x 4096)
        (9, 8, 64, 64, 2),     # 4608 rows -> partial trailing block (row mask)
    ]

    key = jax.random.PRNGKey(0)
    for shp in shapes:
        key, kx, ky = jax.random.split(key, 3)
        x = jax.random.normal(kx, shp, dtype=jnp.float32)
        y = jax.random.normal(ky, shp, dtype=jnp.float32)

        out = jax.block_until_ready(loss_fn(x, y))
        ref = jax.block_until_ready(_reference(x, y, cfg['hdr_eps']))
        assert jnp.allclose(out, ref, rtol=1e-4, atol=1e-6), (shp, out, ref)

    print("KERNEL_OK")
</pallas_src>

<mosaic_0001>
module attributes {stable_mosaic.version = 11 : i64} {
  func.func @_hdr_loss_kernel(%arg0: i32, %arg1: i32, %arg2: memref<32x128xf32, #tpu.memory_space<vmem>>, %arg3: memref<32x128xf32, #tpu.memory_space<vmem>>, %arg4: memref<1x128xf32, #tpu.memory_space<vmem>>) attributes {dimension_semantics = [#tpu.dimension_semantics<parallel>, #tpu.dimension_semantics<arbitrary>], iteration_bounds = array<i64: 1, 1>, scalar_prefetch = 0 : i64, scratch_operands = 0 : i64, tpu.core_type = #tpu.core_type<tc>, window_params = [{transform_indices = @transform_0, window_bounds = array<i64: 32, 128>}, {transform_indices = @transform_1, window_bounds = array<i64: 32, 128>}, {transform_indices = @transform_2, window_bounds = array<i64: 1, 128>}]} {
    %c0_i32 = arith.constant 0 : i32
    %0 = arith.cmpi eq, %arg1, %c0_i32 : i32
    %1 = arith.extui %0 : i1 to i32
    %c0_i32_0 = arith.constant 0 : i32
    %2 = arith.cmpi ne, %1, %c0_i32_0 : i32
    scf.if %2 {
      %cst_13 = arith.constant 0.000000e+00 : f32
      %35 = vector.broadcast %cst_13 : f32 to vector<1x128xf32>
      %c0_14 = arith.constant 0 : index
      %c0_15 = arith.constant 0 : index
      %36 = vector.load %arg4[%c0_14, %c0_15] : memref<1x128xf32, #tpu.memory_space<vmem>>, vector<1x128xf32>
      tpu.vector_store %arg4[%c0_14, %c0_15], %35 {strides = array<i32>} : memref<1x128xf32, #tpu.memory_space<vmem>>, vector<1x128xf32>,
    } else {
    }
    %c0 = arith.constant 0 : index
    %c0_1 = arith.constant 0 : index
    %3 = vector.load %arg2[%c0, %c0_1] : memref<32x128xf32, #tpu.memory_space<vmem>>, vector<32x128xf32>
    %c0_2 = arith.constant 0 : index
    %c0_3 = arith.constant 0 : index
    %4 = vector.load %arg3[%c0_2, %c0_3] : memref<32x128xf32, #tpu.memory_space<vmem>>, vector<32x128xf32>
    %5 = arith.subf %3, %4 : vector<32x128xf32>
    %6 = arith.mulf %5, %5 : vector<32x128xf32>
    %7 = arith.mulf %3, %3 : vector<32x128xf32>
    %8 = tpu.iota {dimensions = array<i32: 1>} : vector<1x128xi32>
    %c1_i32 = arith.constant 1 : i32
    %9 = vector.broadcast %c1_i32 : i32 to vector<1x128xi32>
    %10 = arith.xori %8, %9 : vector<1x128xi32>
    %c1_i32_4 = arith.constant 1 : i32
    %11 = tpu.dynamic_rotate %8 by %c1_i32_4 dim 1 : vector<1x128xi32>, i32 -> vector<1x128xi32>
    %12 = arith.cmpi eq, %11, %10 : vector<1x128xi32>
    %c1_i32_5 = arith.constant 1 : i32
    %13 = tpu.dynamic_rotate %6 by %c1_i32_5 dim 1 : vector<32x128xf32>, i32 -> vector<32x128xf32>
    %c127_i32 = arith.constant 127 : i32
    %14 = tpu.dynamic_rotate %6 by %c127_i32 dim 1 : vector<32x128xf32>, i32 -> vector<32x128xf32>
    %15 = vector.shape_cast %12 : vector<1x128xi1> to vector<1x128xi1>
    %16 = vector.broadcast %15 : vector<1x128xi1> to vector<32x128xi1>
    %17 = arith.select %16, %13, %14 : vector<32x128xi1>, vector<32x128xf32>
    %18 = arith.addf %6, %17 : vector<32x128xf32>
    %c1_i32_6 = arith.constant 1 : i32
    %19 = tpu.dynamic_rotate %7 by %c1_i32_6 dim 1 : vector<32x128xf32>, i32 -> vector<32x128xf32>
    %c127_i32_7 = arith.constant 127 : i32
    %20 = tpu.dynamic_rotate %7 by %c127_i32_7 dim 1 : vector<32x128xf32>, i32 -> vector<32x128xf32>
    %21 = vector.shape_cast %12 : vector<1x128xi1> to vector<1x128xi1>
    %22 = vector.broadcast %21 : vector<1x128xi1> to vector<32x128xi1>
    %23 = arith.select %22, %19, %20 : vector<32x128xi1>, vector<32x128xf32>
    %24 = arith.addf %7, %23 : vector<32x128xf32>
    %25 = math.sqrt %24 : vector<32x128xf32>
    %cst = arith.constant 0.00999999977 : f32
    %26 = vector.broadcast %cst : f32 to vector<32x128xf32>
    %27 = arith.addf %25, %26 : vector<32x128xf32>
    %28 = arith.mulf %27, %27 : vector<32x128xf32>
    %29 = arith.divf %18, %28 : vector<32x128xf32>
    %c0_8 = arith.constant 0 : index
    %c0_9 = arith.constant 0 : index
    %30 = vector.load %arg4[%c0_8, %c0_9] : memref<1x128xf32, #tpu.memory_space<vmem>>, vector<1x128xf32>
    %cst_10 = arith.constant dense<0.000000e+00> : vector<128xf32>
    %31 = vector.multi_reduction <add>, %29, %cst_10 [0] : vector<32x128xf32> to vector<128xf32>
    %32 = vector.shape_cast %31 : vector<128xf32> to vector<1x128xf32>
    %33 = arith.addf %30, %32 : vector<1x128xf32>
    %c0_11 = arith.constant 0 : index
    %c0_12 = arith.constant 0 : index
    %34 = vector.load %arg4[%c0_11, %c0_12] : memref<1x128xf32, #tpu.memory_space<vmem>>, vector<1x128xf32>
    tpu.vector_store %arg4[%c0_11, %c0_12], %33 {strides = array<i32>} : memref<1x128xf32, #tpu.memory_space<vmem>>, vector<1x128xf32>,
    return
  }
  func.func @transform_0(%arg0: i32, %arg1: i32) -> (i32, i32) {
    %c1_i32 = arith.constant 1 : i32
    %0 = arith.muli %arg0, %c1_i32 : i32
    %1 = arith.addi %0, %arg1 : i32
    %c0_i32 = arith.constant 0 : i32
    %2 = arith.minsi %1, %c0_i32 : i32
    %c0_i32_0 = arith.constant 0 : i32
    %c0_i32_1 = arith.constant 0 : i32
    return %2, %c0_i32_0 : i32, i32
  }
  func.func @transform_1(%arg0: i32, %arg1: i32) -> (i32, i32) {
    %c1_i32 = arith.constant 1 : i32
    %0 = arith.muli %arg0, %c1_i32 : i32
    %1 = arith.addi %0, %arg1 : i32
    %c0_i32 = arith.constant 0 : i32
    %2 = arith.minsi %1, %c0_i32 : i32
    %c0_i32_0 = arith.constant 0 : i32
    %c0_i32_1 = arith.constant 0 : i32
    return %2, %c0_i32_0 : i32, i32
  }
  func.func @transform_2(%arg0: i32, %arg1: i32) -> (i32, i32) {
    %c0_i32 = arith.constant 0 : i32
    %c0_i32_0 = arith.constant 0 : i32
    return %arg0, %c0_i32 : i32, i32
  }
}

</mosaic_0001>

<llo_original>
// kernel: tpu_custom_call.1
$region0: #{tpu_custom_call.1}
  #allocation0 [shape = 'u32[]', space=smem, size = 0x4, offset = 0x4, fixed_abs, tag = 'smem constant byte address 0x4 - core index']
  #allocation1 [shape = 'u32[144,128]{1,0:T(1,128)}', space=vmem, size = 0x12000, scoped, tag = 'internal scratch']
  %s0 = inlined_call_operand.hbm [shape: f32[32,128], index: 0, kind: input, shape index: {}]
  %s1 = inlined_call_operand.hbm [shape: f32[32,128], index: 1, kind: input, shape index: {}]
  %s2 = inlined_call_operand.hbm [shape: f32[1,128], index: 2, kind: output, shape index: {}]
  %s3 = sld [smem:[#allocation0]]
  $region30: #{tpu_custom_call.1} parent=0
    _
  %s5 = ssub.s32 1, %s3
  %s6 = scalar_select 0, %s5, %s3
  $region1: #{tpu_custom_call.1} parent=0
    #allocation2 [shape = 'u8[16384]{0}', space=vmem, size = 0x4000, scoped, tag = 'input window, operand 0, single buffered']
    #allocation3 [shape = 's32[1]{0}', space=sflag, size = 0x4, scoped, tag = 'scoped memory for tpu_custom_call.1']
    #allocation4 [shape = 's32[1]{0}', space=sflag, size = 0x4, scoped, tag = 'scoped memory for tpu_custom_call.1']
    #allocation5 [shape = 'u8[16384]{0}', space=vmem, size = 0x4000, scoped, tag = 'input window, operand 1, single buffered']
    #allocation6 [shape = 's32[1]{0}', space=sflag, size = 0x4, scoped, tag = 'scoped memory for tpu_custom_call.1']
    #allocation7 [shape = 'u8[512]{0}', space=vmem, size = 0x400, scoped, tag = 'output window, operand 0, single buffered']
    %7 = vsyncpa [#allocation3], 0
    %8 = vsyncpa [#allocation6], 0
    %9 = vsyncpa [#allocation4], 0
    // Predicated region
    $region2: #{tpu_custom_call.1} parent=1 // pred_check
      _
    $region3: #{tpu_custom_call.1} parent=1 // pred_check_branch
      %11 = sbr.rel (0) target = $region5
    $region4: #{tpu_custom_call.1} parent=1 // pred_region
      %s12 = sadd.s32 0, 0
      %p13 = scmp.lt.s32.totalorder %s12, 0
      %s14 = scalar_select %p13, %s12, 0
      %s15 = smul.u32 4, %s14
      %s17 = ssub.s32 512, 512
      %18 = vsyncadd [#allocation3], %s17
      %s19 = smul.addr %s15, 128
      %s20 = scalar_lea.hbm %s0, %s19
      %s21 = sshll.u32 [#allocation2], 4
      %s22 = int_to_ptr.vmem [resolvable:$true] %s21
      %27 = dma.hbm_to_vmem [thread:$0]  %s20, 512, %s22, [#allocation3], 128, 128, 8
    $region5: #{tpu_custom_call.1} parent=1 // pred_fallthru
      _
    // Predicated region
    $region6: #{tpu_custom_call.1} parent=1 // pred_check
      _
    $region7: #{tpu_custom_call.1} parent=1 // pred_check_branch
      %29 = sbr.rel (0) target = $region9
    $region8: #{tpu_custom_call.1} parent=1 // pred_region
      %s30 = sadd.s32 0, 0
      %p31 = scmp.lt.s32.totalorder %s30, 0
      %s32 = scalar_select %p31, %s30, 0
      %s33 = smul.u32 4, %s32
      %s35 = ssub.s32 512, 512
      %36 = vsyncadd [#allocation6], %s35
      %s37 = smul.addr %s33, 128
      %s38 = scalar_lea.hbm %s1, %s37
      %s39 = sshll.u32 [#allocation5], 4
      %s40 = int_to_ptr.vmem [resolvable:$true] %s39
      %45 = dma.hbm_to_vmem [thread:$0]  %s38, 512, %s40, [#allocation6], 128, 128, 8
    $region9: #{tpu_custom_call.1} parent=1 // pred_fallthru
      _
    // Predicated region
    $region10: #{tpu_custom_call.1} parent=1 // pred_check
      _
    $region11: #{tpu_custom_call.1} parent=1 // pred_check_branch
      %47 = sbr.rel (0) target = $region13
    $region12: #{tpu_custom_call.1} parent=1 // pred_region
      %48 = dma.done [#allocation3], 512
    $region13: #{tpu_custom_call.1} parent=1 // pred_fallthru
      _
    // Predicated region
    $region14: #{tpu_custom_call.1} parent=1 // pred_check
      _
    $region15: #{tpu_custom_call.1} parent=1 // pred_check_branch
      %50 = sbr.rel (0) target = $region17
    $region16: #{tpu_custom_call.1} parent=1 // pred_region
      %51 = dma.done [#allocation6], 512
    $region17: #{tpu_custom_call.1} parent=1 // pred_fallthru
      _
    %s52 = sadd.s32 0, 0
    %p53 = scmp.lt.s32.totalorder %s52, 0
    %s54 = scalar_select %p53, %s52, 0
    %s55 = smul.u32 4, %s54
    %s56 = sadd.s32 0, 0
    %p57 = scmp.lt.s32.totalorder %s56, 0
    %s58 = scalar_select %p57, %s56, 0
    %s59 = smul.u32 4, %s58
    %p60 = scmp.eq.s32.totalorder 0, 0
    // Predicated region
    $region18: #{tpu_custom_call.1} parent=1 // pred_check
      %p61 = pneg %p60
    $region19: #{tpu_custom_call.1} parent=1 // pred_check_branch
      %63 = sbr.rel (%p61) target = $region21
    $region20: #{tpu_custom_call.1} parent=1 // pred_region
      %64 = vst [vmem:[#allocation7] sm:$0x1] 0.0
    $region21: #{tpu_custom_call.1} parent=1 // pred_fallthru
      _
    %v65 = vld [vmem:[#allocation2] sm:$0xff]
    %v66 = vld [vmem:[#allocation2 + $0x8] sm:$0xff]
    %v67 = vld [vmem:[#allocation2 + $0x10] sm:$0xff]
    %v68 = vld [vmem:[#allocation2 + $0x18] sm:$0xff]
    %v69 = vld [vmem:[#allocation5] sm:$0xff]
    %v70 = vld [vmem:[#allocation5 + $0x8] sm:$0xff]
    %v71 = vld [vmem:[#allocation5 + $0x10] sm:$0xff]
    %v72 = vld [vmem:[#allocation5 + $0x18] sm:$0xff]
    %v73 = vsub.f32 %v65, %v69
    %v74 = vsub.f32 %v66, %v70
    %v75 = vsub.f32 %v67, %v71
    %v76 = vsub.f32 %v68, %v72
    %v77 = vmul.f32 %v73, %v73
    %v78 = vmul.f32 %v74, %v74
    %v79 = vmul.f32 %v75, %v75
    %v80 = vmul.f32 %v76, %v76
    %v81 = vmul.f32 %v65, %v65
    %v82 = vmul.f32 %v66, %v66
    %v83 = vmul.f32 %v67, %v67
    %v84 = vmul.f32 %v68, %v68
    %v85 = vlaneseq
    %v86 = vand.u32 %v85, 127
    %v87 = vxor.u32 %v86, 1
    %88 = vrot.lane.b32.xlu0 %v86, 1
    %v89 = vpop.permute.xlu0 %88
    %vm90 = vcmp.eq.s32.totalorder %v89, %v87
    %91 = vrot.lane.b32.xlu0 %v77, 1
    %v92 = vpop.permute.xlu0 %91
    %93 = vrot.lane.b32.xlu0 %v78, 1
    %v94 = vpop.permute.xlu0 %93
    %95 = vrot.lane.b32.xlu0 %v79, 1
    %v96 = vpop.permute.xlu0 %95
    %97 = vrot.lane.b32.xlu0 %v80, 1
    %v98 = vpop.permute.xlu0 %97
    %99 = vrot.lane.b32.xlu0 %v77, 127
    %v100 = vpop.permute.xlu0 %99
    %101 = vrot.lane.b32.xlu0 %v78, 127
    %v102 = vpop.permute.xlu0 %101
    %103 = vrot.lane.b32.xlu0 %v79, 127
    %v104 = vpop.permute.xlu0 %103
    %105 = vrot.lane.b32.xlu0 %v80, 127
    %v106 = vpop.permute.xlu0 %105
    %v107 = vsel %vm90, 1, 0
    %v108 = vlaneseq
    %v109 = vshrl.u32 %v108, 7
    %v110 = vsub.s32 0, %v109
    %v111 = vrot.slane %v107, %v110
    %vm112 = vcmp.eq.s32.totalorder %v111, 1
    %v113 = vsel %vm112, %v92, %v100
    %v114 = vsel %vm112, %v94, %v102
    %v115 = vsel %vm112, %v96, %v104
    %v116 = vsel %vm112, %v98, %v106
    %v117 = vadd.f32 %v77, %v113
    %v118 = vadd.f32 %v78, %v114
    %v119 = vadd.f32 %v79, %v115
    %v120 = vadd.f32 %v80, %v116
    %121 = vrot.lane.b32.xlu0 %v81, 1
    %v122 = vpop.permute.xlu0 %121
    %123 = vrot.lane.b32.xlu0 %v82, 1
    %v124 = vpop.permute.xlu0 %123
    %125 = vrot.lane.b32.xlu0 %v83, 1
    %v126 = vpop.permute.xlu0 %125
    %127 = vrot.lane.b32.xlu0 %v84, 1
    %v128 = vpop.permute.xlu0 %127
    %129 = vrot.lane.b32.xlu0 %v81, 127
    %v130 = vpop.permute.xlu0 %129
    %131 = vrot.lane.b32.xlu0 %v82, 127
    %v132 = vpop.permute.xlu0 %131
    %133 = vrot.lane.b32.xlu0 %v83, 127
    %v134 = vpop.permute.xlu0 %133
    %135 = vrot.lane.b32.xlu0 %v84, 127
    %v136 = vpop.permute.xlu0 %135
    %v137 = vsel %vm112, %v122, %v130
    %v138 = vsel %vm112, %v124, %v132
    %v139 = vsel %vm112, %v126, %v134
    %v140 = vsel %vm112, %v128, %v136
    %v141 = vadd.f32 %v81, %v137
    %v142 = vadd.f32 %v82, %v138
    %v143 = vadd.f32 %v83, %v139
    %v144 = vadd.f32 %v84, %v140
    %v145 = vrsqrt.pop %v141
    %v146 = vmul.f32 %v141, %v145
    %vm147 = vcmp.eq.f32.partialorder %v141, inf
    %v148 = vsel %vm147, %v141, %v146
    %vm149 = vcmp.eq.f32.partialorder %v141, 0.0
    %v150 = vand.u32 %v141, 2147483648
    %v151 = vsel %vm149, %v150, %v148
    %v152 = vrsqrt.pop %v142
    %v153 = vmul.f32 %v142, %v152
    %vm154 = vcmp.eq.f32.partialorder %v142, inf
    %v155 = vsel %vm154, %v142, %v153
    %vm156 = vcmp.eq.f32.partialorder %v142, 0.0
    %v157 = vand.u32 %v142, 2147483648
    %v158 = vsel %vm156, %v157, %v155
    %v159 = vrsqrt.pop %v143
    %v160 = vmul.f32 %v143, %v159
    %vm161 = vcmp.eq.f32.partialorder %v143, inf
    %v162 = vsel %vm161, %v143, %v160
    %vm163 = vcmp.eq.f32.partialorder %v143, 0.0
    %v164 = vand.u32 %v143, 2147483648
    %v165 = vsel %vm163, %v164, %v162
    %v166 = vrsqrt.pop %v144
    %v167 = vmul.f32 %v144, %v166
    %vm168 = vcmp.eq.f32.partialorder %v144, inf
    %v169 = vsel %vm168, %v144, %v167
    %vm170 = vcmp.eq.f32.partialorder %v144, 0.0
    %v171 = vand.u32 %v144, 2147483648
    %v172 = vsel %vm170, %v171, %v169
    %v173 = vadd.f32 %v151, 0.01
    %v174 = vadd.f32 %v158, 0.01
    %v175 = vadd.f32 %v165, 0.01
    %v176 = vadd.f32 %v172, 0.01
    %v177 = vmul.f32 %v173, %v173
    %v178 = vmul.f32 %v174, %v174
    %v179 = vmul.f32 %v175, %v175
    %v180 = vmul.f32 %v176, %v176
    %v181 = vrcp.pop %v177
    %v182 = vmul.f32 %v117, %v181
    %v183 = vrcp.pop %v178
    %v184 = vmul.f32 %v118, %v183
    %v185 = vrcp.pop %v179
    %v186 = vmul.f32 %v119, %v185
    %v187 = vrcp.pop %v180
    %v188 = vmul.f32 %v120, %v187
    %v189 = vld [vmem:[#allocation7] sm:$0x1]
    %v190 = vadd.f32 %v182, %v184
    %v191 = vadd.f32 %v190, %v186
    %v192 = vadd.f32 %v191, %v188
    %v193 = vrot.slane %v192, 4
    %v194 = vadd.f32 %v192, %v193
    %v195 = vrot.slane %v194, 2
    %v196 = vadd.f32 %v194, %v195
    %v197 = vrot.slane %v196, 1
    %v198 = vadd.f32 %v196, %v197
    %v199 = vadd.f32 %v189, %v198
    %200 = vst [vmem:[#allocation7] sm:$0x1] %v199
    // Predicated region
    $region22: #{tpu_custom_call.1} parent=1 // pred_check
      _
    $region23: #{tpu_custom_call.1} parent=1 // pred_check_branch
      %202 = sbr.rel (0) target = $region25
    $region24: #{tpu_custom_call.1} parent=1 // pred_region
      %s204 = ssub.s32 16, 16
      %205 = vsyncadd [#allocation4], %s204
      %s207 = sshll.u32 [#allocation7], 4
      %s208 = int_to_ptr.vmem [resolvable:$true] %s207
      %210 = dma.vmem_to_hbm [thread:$0]  %s208, 16, %s2, [#allocation4]
    $region25: #{tpu_custom_call.1} parent=1 // pred_fallthru
      _
    // Predicated region
    $region26: #{tpu_custom_call.1} parent=1 // pred_check
      _
    $region27: #{tpu_custom_call.1} parent=1 // pred_check_branch
      %212 = sbr.rel (0) target = $region29
    $region28: #{tpu_custom_call.1} parent=1 // pred_region
      %213 = dma.done [#allocation4], 16
    $region29: #{tpu_custom_call.1} parent=1 // pred_fallthru
      _
    %214 = vsyncpa [#allocation3], 1
    %215 = vsyncpa [#allocation6], 1
    %216 = vsyncpa [#allocation4], 1

</llo_original>
